<compile_context>
chip_gen: v6e
topology: v6e:2x2x1
jax: 0.10.0
libtpu: 0.0.40
codegen_flags: <defaults>
</compile_context>

<pallas_src>
import jax
import jax.numpy as jnp
from jax.experimental import pallas as pl
from jax.experimental.pallas import tpu as pltpu


def _round_up(x, m):
    return (x + m - 1) // m * m


def _fold_bn(gamma, beta, mean, var, eps=1e-5):
    scale = gamma / jnp.sqrt(var + eps)
    shift = beta - mean * scale
    return scale, shift


def _make_kernel(n_feat):
    """Kernel for one (batch, spatial-tile) grid cell, NCHW-native.

    Ref order:
      [x_0, s1_0, sh1_0, w1t_0, ..., x_{k-1}, s1_{k-1}, sh1_{k-1}, w1t_{k-1},
       b1f, w2t, b2, out]
    """
    def kernel(*refs):
        o_ref = refs[-1]
        b1f_ref, w2t_ref, b2_ref = refs[4 * n_feat:4 * n_feat + 3]

        acc = None
        for i in range(n_feat):
            x_ref, s_ref, sh_ref, w_ref = refs[4 * i:4 * i + 4]
            x = x_ref[0].astype(jnp.float32)                    # (C_i, TS), spatial on lanes
            h = jnp.maximum(x * s_ref[...] + sh_ref[...], 0.0)  # BN1 + ReLU
            part = jnp.dot(w_ref[...], h,                       # (C_mid, TS)
                           preferred_element_type=jnp.float32)
            acc = part if acc is None else acc + part

        # conv1 bias (with BN2 folded in) + ReLU, then conv2.
        h1 = jnp.maximum(acc + b1f_ref[...], 0.0)               # (C_mid, TS)
        y = jnp.dot(w2t_ref[...], h1,
                    preferred_element_type=jnp.float32) + b2_ref[...]
        o_ref[0] = y.astype(o_ref.dtype)                        # (C_out, TS), lane-dense store
    return kernel


def dense_layer_forward(x_list, params, *, ts=1024):
    """x_list: list of NCHW arrays (DenseNet prev_features), or a single array.

    Returns NCHW output (N, growth_rate, H, W).
    """
    if not isinstance(x_list, (list, tuple)):
        x_list = [x_list]
    x_list = list(x_list)

    N, _, H, W = x_list[0].shape
    HW = H * W
    feat_ch = [int(xi.shape[1]) for xi in x_list]
    C_in = sum(feat_ch)
    C_mid = params["w1"].shape[1]
    C_out = params["w2"].shape[1]
    out_dtype = x_list[0].dtype

    # Spatial tile: multiple of 128 lanes, as large as sensible.
    ts = max(128, min(_round_up(ts, 128), _round_up(HW, 128)))
    n_tiles = (HW + ts - 1) // ts
    hw_pad = n_tiles * ts

    # (N, C, H, W) -> (N, C, H*W) is a free view; zero-pad the spatial axis if
    # needed (padded columns produce garbage that is sliced off at the end).
    xs = []
    for xi in x_list:
        xr = xi.reshape(N, xi.shape[1], HW)
        if hw_pad != HW:
            xr = jnp.pad(xr, ((0, 0), (0, 0), (0, hw_pad - HW)))
        xs.append(xr)

    f32 = jnp.float32
    s1, sh1 = _fold_bn(params["bn1_gamma"].astype(f32), params["bn1_beta"].astype(f32),
                       params["bn1_mean"].astype(f32), params["bn1_var"].astype(f32))
    s2, sh2 = _fold_bn(params["bn2_gamma"].astype(f32), params["bn2_beta"].astype(f32),
                       params["bn2_mean"].astype(f32), params["bn2_var"].astype(f32))

    # Fold BN2 into conv1: BN2(z @ W1 + b1) == z @ (W1 * s2) + (b1 * s2 + sh2).
    w1f = params["w1"].astype(f32) * s2[None, :]           # (C_in, C_mid)
    b1f = params["b1"].astype(f32) * s2 + sh2              # (C_mid,)
    w1t = w1f.T                                            # (C_mid, C_in), tiny one-time transpose
    w2t = params["w2"].astype(f32).T                       # (C_out, C_mid)
    b2 = params["b2"].astype(f32)

    x_map = lambda n, j: (n, 0, j)
    full2 = lambda n, j: (0, 0)

    inputs, in_specs = [], []
    off = 0
    for xr, c in zip(xs, feat_ch):
        inputs += [xr,
                   s1[off:off + c].reshape(c, 1),
                   sh1[off:off + c].reshape(c, 1),
                   w1t[:, off:off + c]]
        in_specs += [pl.BlockSpec((1, c, ts), x_map),
                     pl.BlockSpec((c, 1), full2),
                     pl.BlockSpec((c, 1), full2),
                     pl.BlockSpec((C_mid, c), full2)]
        off += c

    inputs += [b1f.reshape(C_mid, 1), w2t, b2.reshape(C_out, 1)]
    in_specs += [pl.BlockSpec((C_mid, 1), full2),
                 pl.BlockSpec((C_out, C_mid), full2),
                 pl.BlockSpec((C_out, 1), full2)]

    itemsize = jnp.dtype(out_dtype).itemsize
    cost = pl.CostEstimate(
        flops=2 * N * HW * (C_in * C_mid + C_mid * C_out),
        transcendentals=0,
        bytes_accessed=(N * HW * (C_in + C_out) * itemsize
                        + 4 * (C_in * C_mid + C_mid * C_out
                               + 2 * C_in + 2 * C_mid + C_out)))

    out = pl.pallas_call(
        _make_kernel(len(xs)),
        out_shape=jax.ShapeDtypeStruct((N, C_out, hw_pad), out_dtype),
        grid_spec=pltpu.PrefetchScalarGridSpec(
            num_scalar_prefetch=0,
            grid=(N, n_tiles),
            in_specs=in_specs,
            out_specs=pl.BlockSpec((1, C_out, ts), x_map)),
        compiler_params=pltpu.CompilerParams(
            dimension_semantics=("parallel", "parallel")),
        cost_estimate=cost,
    )(*inputs)

    if hw_pad != HW:
        out = out[:, :, :HW]
    return out.reshape(N, C_out, H, W)          # already NCHW — no transpose needed


def _reference_forward(x_list, params):
    """Pure-JAX reference of the same eval-mode forward, for a sanity check."""
    if not isinstance(x_list, (list, tuple)):
        x_list = [x_list]
    x = jnp.concatenate(x_list, axis=1).astype(jnp.float32)   # NCHW
    N, C, H, W = x.shape
    xm = jnp.transpose(x, (0, 2, 3, 1)).reshape(-1, C)
    s1, sh1 = _fold_bn(params["bn1_gamma"], params["bn1_beta"],
                       params["bn1_mean"], params["bn1_var"])
    s2, sh2 = _fold_bn(params["bn2_gamma"], params["bn2_beta"],
                       params["bn2_mean"], params["bn2_var"])
    h = jnp.maximum(xm * s1 + sh1, 0.0) @ params["w1"] + params["b1"]
    y = jnp.maximum(h * s2 + sh2, 0.0) @ params["w2"] + params["b2"]
    C_out = params["w2"].shape[1]
    return jnp.transpose(y.reshape(N, H, W, C_out), (0, 3, 1, 2))


if __name__ == "__main__":
    # Module config (small): input_dim=8, growth_rate=8, bn_size=4, drop_rate=0.0
    input_dim, growth_rate, bn_size = 8, 8, 4
    C_mid = bn_size * growth_rate        # 32
    C_out = growth_rate                  # 8
    N, H, W = 2, 16, 16

    key = jax.random.PRNGKey(0)
    ks = jax.random.split(key, 12)

    # Two "previous feature" tensors of 4 channels each -> concat to input_dim=8 (NCHW).
    x0 = jax.random.normal(ks[0], (N, 4, H, W), dtype=jnp.float32)
    x1 = jax.random.normal(ks[1], (N, 4, H, W), dtype=jnp.float32)

    params = {
        # BatchNorm2d(input_dim) — eval-mode running stats + affine
        "bn1_gamma": jax.random.uniform(ks[2], (input_dim,), minval=0.5, maxval=1.5),
        "bn1_beta":  jax.random.normal(ks[3], (input_dim,)) * 0.1,
        "bn1_mean":  jax.random.normal(ks[4], (input_dim,)) * 0.1,
        "bn1_var":   jax.random.uniform(ks[5], (input_dim,), minval=0.5, maxval=1.5),
        # Conv2d(input_dim, C_mid, 1) — weight stored as (C_in, C_mid) for x @ W
        "w1": jax.random.normal(ks[6], (input_dim, C_mid), dtype=jnp.float32) * 0.1,
        "b1": jax.random.normal(ks[7], (C_mid,), dtype=jnp.float32) * 0.05,
        # BatchNorm2d(C_mid)
        "bn2_gamma": jax.random.uniform(ks[8], (C_mid,), minval=0.5, maxval=1.5),
        "bn2_beta":  jax.random.normal(ks[9], (C_mid,)) * 0.1,
        "bn2_mean":  jnp.zeros((C_mid,), jnp.float32),
        "bn2_var":   jnp.ones((C_mid,), jnp.float32),
        # Conv2d(C_mid, growth_rate, 1)
        "w2": jax.random.normal(ks[10], (C_mid, C_out), dtype=jnp.float32) * 0.1,
        "b2": jax.random.normal(ks[11], (C_out,), dtype=jnp.float32) * 0.05,
    }

    y = dense_layer_forward([x0, x1], params)
    y = jax.block_until_ready(y)

    y_ref = _reference_forward([x0, x1], params)
    assert y.shape == (N, C_out, H, W)
    assert jnp.allclose(y, y_ref, atol=1e-4, rtol=1e-4)

    print("KERNEL_OK")
</pallas_src>

<mosaic_0001>
module attributes {stable_mosaic.version = 11 : i64} {
  func.func @kernel(%arg0: i32, %arg1: i32, %arg2: memref<1x4x256xf32, #tpu.memory_space<vmem>>, %arg3: memref<4x1xf32, #tpu.memory_space<vmem>>, %arg4: memref<4x1xf32, #tpu.memory_space<vmem>>, %arg5: memref<32x4xf32, #tpu.memory_space<vmem>>, %arg6: memref<1x4x256xf32, #tpu.memory_space<vmem>>, %arg7: memref<4x1xf32, #tpu.memory_space<vmem>>, %arg8: memref<4x1xf32, #tpu.memory_space<vmem>>, %arg9: memref<32x4xf32, #tpu.memory_space<vmem>>, %arg10: memref<32x1xf32, #tpu.memory_space<vmem>>, %arg11: memref<8x32xf32, #tpu.memory_space<vmem>>, %arg12: memref<8x1xf32, #tpu.memory_space<vmem>>, %arg13: memref<1x8x256xf32, #tpu.memory_space<vmem>>) attributes {dimension_semantics = [#tpu.dimension_semantics<parallel>, #tpu.dimension_semantics<parallel>], iteration_bounds = array<i64: 2, 1>, scalar_prefetch = 0 : i64, scratch_operands = 0 : i64, tpu.core_type = #tpu.core_type<tc>, window_params = [{transform_indices = @transform_0, window_bounds = array<i64: 1, 4, 256>}, {pipeline_mode = #tpu.pipeline_mode<synchronous>, transform_indices = @transform_1, window_bounds = array<i64: 4, 1>}, {pipeline_mode = #tpu.pipeline_mode<synchronous>, transform_indices = @transform_2, window_bounds = array<i64: 4, 1>}, {pipeline_mode = #tpu.pipeline_mode<synchronous>, transform_indices = @transform_3, window_bounds = array<i64: 32, 4>}, {transform_indices = @transform_4, window_bounds = array<i64: 1, 4, 256>}, {pipeline_mode = #tpu.pipeline_mode<synchronous>, transform_indices = @transform_5, window_bounds = array<i64: 4, 1>}, {pipeline_mode = #tpu.pipeline_mode<synchronous>, transform_indices = @transform_6, window_bounds = array<i64: 4, 1>}, {pipeline_mode = #tpu.pipeline_mode<synchronous>, transform_indices = @transform_7, window_bounds = array<i64: 32, 4>}, {pipeline_mode = #tpu.pipeline_mode<synchronous>, transform_indices = @transform_8, window_bounds = array<i64: 32, 1>}, {pipeline_mode = #tpu.pipeline_mode<synchronous>, transform_indices = @transform_9, window_bounds = array<i64: 8, 32>}, {pipeline_mode = #tpu.pipeline_mode<synchronous>, transform_indices = @transform_10, window_bounds = array<i64: 8, 1>}, {transform_indices = @transform_11, window_bounds = array<i64: 1, 8, 256>}]} {
    %c0 = arith.constant 0 : index
    %c0_0 = arith.constant 0 : index
    %c0_1 = arith.constant 0 : index
    %0 = vector.load %arg2[%c0, %c0_0, %c0_1] : memref<1x4x256xf32, #tpu.memory_space<vmem>>, vector<1x4x256xf32>
    %1 = vector.shape_cast %0 : vector<1x4x256xf32> to vector<4x256xf32>
    %c0_2 = arith.constant 0 : index
    %c0_3 = arith.constant 0 : index
    %2 = vector.load %arg3[%c0_2, %c0_3] : memref<4x1xf32, #tpu.memory_space<vmem>>, vector<4x1xf32>
    %3 = vector.broadcast %2 : vector<4x1xf32> to vector<4x256xf32>
    %4 = arith.mulf %1, %3 : vector<4x256xf32>
    %c0_4 = arith.constant 0 : index
    %c0_5 = arith.constant 0 : index
    %5 = vector.load %arg4[%c0_4, %c0_5] : memref<4x1xf32, #tpu.memory_space<vmem>>, vector<4x1xf32>
    %6 = vector.broadcast %5 : vector<4x1xf32> to vector<4x256xf32>
    %7 = arith.addf %4, %6 : vector<4x256xf32>
    %cst = arith.constant 0.000000e+00 : f32
    %8 = vector.broadcast %cst : f32 to vector<4x256xf32>
    %9 = arith.maximumf %7, %8 : vector<4x256xf32>
    %c0_6 = arith.constant 0 : index
    %c0_7 = arith.constant 0 : index
    %10 = vector.load %arg5[%c0_6, %c0_7] : memref<32x4xf32, #tpu.memory_space<vmem>>, vector<32x4xf32>
    %cst_8 = arith.constant dense<0.000000e+00> : vector<32x256xf32>
    %11 = tpu.matmul %10, %9, %cst_8 {dimension_numbers = #tpu.dot_dimension_numbers<[1], [0], [0], [1], [0, 0, 1, 1], [], []>} : vector<32x4xf32>, vector<4x256xf32>, vector<32x256xf32> -> vector<32x256xf32>
    %c0_9 = arith.constant 0 : index
    %c0_10 = arith.constant 0 : index
    %c0_11 = arith.constant 0 : index
    %12 = vector.load %arg6[%c0_9, %c0_10, %c0_11] : memref<1x4x256xf32, #tpu.memory_space<vmem>>, vector<1x4x256xf32>
    %13 = vector.shape_cast %12 : vector<1x4x256xf32> to vector<4x256xf32>
    %c0_12 = arith.constant 0 : index
    %c0_13 = arith.constant 0 : index
    %14 = vector.load %arg7[%c0_12, %c0_13] : memref<4x1xf32, #tpu.memory_space<vmem>>, vector<4x1xf32>
    %15 = vector.broadcast %14 : vector<4x1xf32> to vector<4x256xf32>
    %16 = arith.mulf %13, %15 : vector<4x256xf32>
    %c0_14 = arith.constant 0 : index
    %c0_15 = arith.constant 0 : index
    %17 = vector.load %arg8[%c0_14, %c0_15] : memref<4x1xf32, #tpu.memory_space<vmem>>, vector<4x1xf32>
    %18 = vector.broadcast %17 : vector<4x1xf32> to vector<4x256xf32>
    %19 = arith.addf %16, %18 : vector<4x256xf32>
    %cst_16 = arith.constant 0.000000e+00 : f32
    %20 = vector.broadcast %cst_16 : f32 to vector<4x256xf32>
    %21 = arith.maximumf %19, %20 : vector<4x256xf32>
    %c0_17 = arith.constant 0 : index
    %c0_18 = arith.constant 0 : index
    %22 = vector.load %arg9[%c0_17, %c0_18] : memref<32x4xf32, #tpu.memory_space<vmem>>, vector<32x4xf32>
    %cst_19 = arith.constant dense<0.000000e+00> : vector<32x256xf32>
    %23 = tpu.matmul %22, %21, %cst_19 {dimension_numbers = #tpu.dot_dimension_numbers<[1], [0], [0], [1], [0, 0, 1, 1], [], []>} : vector<32x4xf32>, vector<4x256xf32>, vector<32x256xf32> -> vector<32x256xf32>
    %24 = arith.addf %11, %23 : vector<32x256xf32>
    %c0_20 = arith.constant 0 : index
    %c0_21 = arith.constant 0 : index
    %25 = vector.load %arg10[%c0_20, %c0_21] : memref<32x1xf32, #tpu.memory_space<vmem>>, vector<32x1xf32>
    %26 = vector.broadcast %25 : vector<32x1xf32> to vector<32x256xf32>
    %27 = arith.addf %24, %26 : vector<32x256xf32>
    %cst_22 = arith.constant 0.000000e+00 : f32
    %28 = vector.broadcast %cst_22 : f32 to vector<32x256xf32>
    %29 = arith.maximumf %27, %28 : vector<32x256xf32>
    %c0_23 = arith.constant 0 : index
    %c0_24 = arith.constant 0 : index
    %30 = vector.load %arg11[%c0_23, %c0_24] : memref<8x32xf32, #tpu.memory_space<vmem>>, vector<8x32xf32>
    %cst_25 = arith.constant dense<0.000000e+00> : vector<8x256xf32>
    %31 = tpu.matmul %30, %29, %cst_25 {dimension_numbers = #tpu.dot_dimension_numbers<[1], [0], [0], [1], [0, 0, 1, 1], [], []>} : vector<8x32xf32>, vector<32x256xf32>, vector<8x256xf32> -> vector<8x256xf32>
    %c0_26 = arith.constant 0 : index
    %c0_27 = arith.constant 0 : index
    %32 = vector.load %arg12[%c0_26, %c0_27] : memref<8x1xf32, #tpu.memory_space<vmem>>, vector<8x1xf32>
    %33 = vector.broadcast %32 : vector<8x1xf32> to vector<8x256xf32>
    %34 = arith.addf %31, %33 : vector<8x256xf32>
    %c0_28 = arith.constant 0 : index
    %c0_29 = arith.constant 0 : index
    %c0_30 = arith.constant 0 : index
    %35 = vector.load %arg13[%c0_28, %c0_29, %c0_30] : memref<1x8x256xf32, #tpu.memory_space<vmem>>, vector<1x8x256xf32>
    %36 = vector.shape_cast %35 : vector<1x8x256xf32> to vector<8x256xf32>
    %37 = vector.shape_cast %34 : vector<8x256xf32> to vector<1x8x256xf32>
    tpu.vector_store %arg13[%c0_28, %c0_29, %c0_30], %37 {strides = array<i32>} : memref<1x8x256xf32, #tpu.memory_space<vmem>>, vector<1x8x256xf32>,
    return
  }
  func.func @transform_0(%arg0: i32, %arg1: i32) -> (i32, i32, i32) {
    %c0_i32 = arith.constant 0 : i32
    %c0_i32_0 = arith.constant 0 : i32
    return %arg0, %c0_i32, %arg1 : i32, i32, i32
  }
  func.func @transform_1(%arg0: i32, %arg1: i32) -> (i32, i32) {
    %c0_i32 = arith.constant 0 : i32
    %c0_i32_0 = arith.constant 0 : i32
    %c0_i32_1 = arith.constant 0 : i32
    return %c0_i32, %c0_i32_0 : i32, i32
  }
  func.func @transform_2(%arg0: i32, %arg1: i32) -> (i32, i32) {
    %c0_i32 = arith.constant 0 : i32
    %c0_i32_0 = arith.constant 0 : i32
    %c0_i32_1 = arith.constant 0 : i32
    return %c0_i32, %c0_i32_0 : i32, i32
  }
  func.func @transform_3(%arg0: i32, %arg1: i32) -> (i32, i32) {
    %c0_i32 = arith.constant 0 : i32
    %c0_i32_0 = arith.constant 0 : i32
    %c0_i32_1 = arith.constant 0 : i32
    return %c0_i32, %c0_i32_0 : i32, i32
  }
  func.func @transform_4(%arg0: i32, %arg1: i32) -> (i32, i32, i32) {
    %c0_i32 = arith.constant 0 : i32
    %c0_i32_0 = arith.constant 0 : i32
    return %arg0, %c0_i32, %arg1 : i32, i32, i32
  }
  func.func @transform_5(%arg0: i32, %arg1: i32) -> (i32, i32) {
    %c0_i32 = arith.constant 0 : i32
    %c0_i32_0 = arith.constant 0 : i32
    %c0_i32_1 = arith.constant 0 : i32
    return %c0_i32, %c0_i32_0 : i32, i32
  }
  func.func @transform_6(%arg0: i32, %arg1: i32) -> (i32, i32) {
    %c0_i32 = arith.constant 0 : i32
    %c0_i32_0 = arith.constant 0 : i32
    %c0_i32_1 = arith.constant 0 : i32
    return %c0_i32, %c0_i32_0 : i32, i32
  }
  func.func @transform_7(%arg0: i32, %arg1: i32) -> (i32, i32) {
    %c0_i32 = arith.constant 0 : i32
    %c0_i32_0 = arith.constant 0 : i32
    %c0_i32_1 = arith.constant 0 : i32
    return %c0_i32, %c0_i32_0 : i32, i32
  }
  func.func @transform_8(%arg0: i32, %arg1: i32) -> (i32, i32) {
    %c0_i32 = arith.constant 0 : i32
    %c0_i32_0 = arith.constant 0 : i32
    %c0_i32_1 = arith.constant 0 : i32
    return %c0_i32, %c0_i32_0 : i32, i32
  }
  func.func @transform_9(%arg0: i32, %arg1: i32) -> (i32, i32) {
    %c0_i32 = arith.constant 0 : i32
    %c0_i32_0 = arith.constant 0 : i32
    %c0_i32_1 = arith.constant 0 : i32
    return %c0_i32, %c0_i32_0 : i32, i32
  }
  func.func @transform_10(%arg0: i32, %arg1: i32) -> (i32, i32) {
    %c0_i32 = arith.constant 0 : i32
    %c0_i32_0 = arith.constant 0 : i32
    %c0_i32_1 = arith.constant 0 : i32
    return %c0_i32, %c0_i32_0 : i32, i32
  }
  func.func @transform_11(%arg0: i32, %arg1: i32) -> (i32, i32, i32) {
    %c0_i32 = arith.constant 0 : i32
    %c0_i32_0 = arith.constant 0 : i32
    return %arg0, %c0_i32, %arg1 : i32, i32, i32
  }
}

</mosaic_0001>

<llo_original>
// kernel: tpu_custom_call.1
$region0: #{tpu_custom_call.1}
  #allocation0 [shape = 'u32[]', space=smem, size = 0x4, offset = 0x4, fixed_abs, tag = 'smem constant byte address 0x4 - core index']
  #allocation1 [shape = 'u32[144,128]{1,0:T(1,128)}', space=vmem, size = 0x12000, scoped, tag = 'internal scratch']
  %s0 = inlined_call_operand.vmem [shape: f32[2,4,256], index: 0, kind: input, shape index: {}]
  %s1 = inlined_call_operand.vmem [shape: f32[4,1], index: 1, kind: input, shape index: {}]
  %s2 = inlined_call_operand.vmem [shape: f32[4,1], index: 2, kind: input, shape index: {}]
  %s3 = inlined_call_operand.vmem [shape: f32[32,4], index: 3, kind: input, shape index: {}]
  %s4 = inlined_call_operand.vmem [shape: f32[2,4,256], index: 4, kind: input, shape index: {}]
  %s5 = inlined_call_operand.vmem [shape: f32[4,1], index: 5, kind: input, shape index: {}]
  %s6 = inlined_call_operand.vmem [shape: f32[4,1], index: 6, kind: input, shape index: {}]
  %s7 = inlined_call_operand.vmem [shape: f32[32,4], index: 7, kind: input, shape index: {}]
  %s8 = inlined_call_operand.vmem [shape: f32[32,1], index: 8, kind: input, shape index: {}]
  %s9 = inlined_call_operand.vmem [shape: f32[8,32], index: 9, kind: input, shape index: {}]
  %s10 = inlined_call_operand.vmem [shape: f32[8,1], index: 10, kind: input, shape index: {}]
  %s11 = inlined_call_operand.hbm [shape: f32[2,8,256], index: 11, kind: output, shape index: {}]
  %s12 = sld [smem:[#allocation0]]
  $region77: #{tpu_custom_call.1} parent=0
    _
  %s14 = ssub.s32 1, %s12
  %s15 = scalar_select 0, %s14, %s12
  $region1: #{tpu_custom_call.1} parent=0
    #allocation2 [shape = 'u8[16384]{0}', space=vmem, size = 0x4000, scoped, tag = 'output window, operand 0']
    #allocation3 [shape = 's32[2]{0}', space=sflag, size = 0x8, scoped, tag = 'scoped memory for tpu_custom_call.1']
    %16 = vsyncpa [#allocation3], 0
    %s17 = scalar_lea.sflag [#allocation3], 1
    %18 = vsyncpa %s17, 0
    loop: start=0, step=1, limit=4
    $region2: #{tpu_custom_call.1} parent=1 // loop_pre_header
      _
    $region3: #{tpu_custom_call.1} parent=1 // loop_header
      %s20 = sphi 0, %s24
      %p21 = scmp.ge.s32.totalorder %s20, 4
      %s27 = sphi 0, %s39
      %s28 = sphi 0, %s35
      %s29 = sphi 0, %s27
      %s30 = sphi 0, %s28
      %s31 = sphi 0, %s29
      %s32 = sphi 0, %s30
      %s44 = sphi 0, %s46
      %s47 = sphi 0, %s44
      %s48 = sphi 0, %s47
      %s64 = sphi 0, %s48
      %s68 = sphi 0, %s68
      %s70 = sphi 0, %s68
      %s71 = sphi 0, %s70
      %s85 = sphi 0, %s71
      %s89 = sphi 0, %s89
      %s91 = sphi 0, %s89
      %s92 = sphi 0, %s91
      %s106 = sphi 0, %s92
      %s110 = sphi 0, %s110
      %s112 = sphi 0, %s110
      %s113 = sphi 0, %s112
      %s127 = sphi 0, %s113
      %s135 = sphi 0, %s137
      %s138 = sphi 0, %s135
      %s139 = sphi 0, %s138
      %s155 = sphi 0, %s139
      %s159 = sphi 0, %s159
      %s161 = sphi 0, %s159
      %s162 = sphi 0, %s161
      %s176 = sphi 0, %s162
      %s180 = sphi 0, %s180
      %s182 = sphi 0, %s180
      %s183 = sphi 0, %s182
      %s197 = sphi 0, %s183
      %s201 = sphi 0, %s201
      %s203 = sphi 0, %s201
      %s204 = sphi 0, %s203
      %s218 = sphi 0, %s204
      %s222 = sphi 0, %s222
      %s224 = sphi 0, %s222
      %s225 = sphi 0, %s224
      %s239 = sphi 0, %s225
      %s243 = sphi 0, %s243
      %s245 = sphi 0, %s243
      %s246 = sphi 0, %s245
      %s260 = sphi 0, %s246
      %s264 = sphi 0, %s264
      %s266 = sphi 0, %s264
      %s267 = sphi 0, %s266
      %s281 = sphi 0, %s267
      %s289 = sphi 0, %s291
      %s292 = sphi 0, %s289
      %s293 = sphi 0, %s292
      %s309 = sphi 0, %s293
    $region4: #{tpu_custom_call.1} parent=1 // loop_header_branch
      %23 = sbr.rel (%p21) target = $region8
    $region5: #{tpu_custom_call.1} parent=1 // loop_body
      %s25 = ssub.s32 %s20, 1
      %s26 = ssub.s32 %s20, 2
      %s33 = sadd.s32 1, %s28
      %p34 = scmp.ge.s32.totalorder %s33, 1
      %s35 = scalar_select %p34, 0, %s33
      %s36 = sadd.s32 1, %s27
      %s37 = scalar_select %p34, %s36, %s27
      %p38 = scmp.ge.s32.totalorder %s37, 2
      %s39 = scalar_select %p38, 0, %s37
      %s40 = ssub.s32 %s27, %s39
      %s41 = ssub.s32 %s28, %s35
      %s42 = sor.u32 %s40, %s41
      %p43 = scmp.eq.s32.totalorder %s42, 0
      %s45 = sadd.s32 %s44, 1
      %s46 = scalar_select %p43, %s44, %s45
      %p49 = pneg %p43
      %p50 = scmp.eq.s32.totalorder %s20, 1
      %p51 = por %p49, %p50
      %p52 = scmp.ne.s32.totalorder %s44, %s47
      %p53 = scmp.eq.s32.totalorder %s20, 0
      %p54 = por %p52, %p53
      %p55 = scmp.ne.s32.totalorder %s44, %s47
      %p56 = scmp.eq.s32.totalorder %s25, 1
      %p57 = por %p55, %p56
      %p58 = scmp.ne.s32.totalorder %s47, %s48
      %p59 = scmp.eq.s32.totalorder %s25, 0
      %p60 = por %p58, %p59
      %p61 = scmp.ne.s32.totalorder %s47, %s48
      %p62 = scmp.eq.s32.totalorder %s26, 1
      %p63 = por %p61, %p62
      %p65 = scmp.ne.s32.totalorder %s48, %s64
      %p66 = scmp.eq.s32.totalorder %s26, 0
      %p67 = por %p65, %p66
      %s69 = sadd.s32 %s68, 1
      %p72 = scmp.eq.s32.totalorder %s20, 1
      %p73 = scmp.ne.s32.totalorder %s68, %s70
      %p74 = scmp.eq.s32.totalorder %s20, 0
      %p75 = por %p73, %p74
      %p76 = scmp.ne.s32.totalorder %s68, %s70
      %p77 = scmp.eq.s32.totalorder %s25, 1
      %p78 = por %p76, %p77
      %p79 = scmp.ne.s32.totalorder %s70, %s71
      %p80 = scmp.eq.s32.totalorder %s25, 0
      %p81 = por %p79, %p80
      %p82 = scmp.ne.s32.totalorder %s70, %s71
      %p83 = scmp.eq.s32.totalorder %s26, 1
      %p84 = por %p82, %p83
      %p86 = scmp.ne.s32.totalorder %s71, %s85
      %p87 = scmp.eq.s32.totalorder %s26, 0
      %p88 = por %p86, %p87
      %s90 = sadd.s32 %s89, 1
      %p93 = scmp.eq.s32.totalorder %s20, 1
      %p94 = scmp.ne.s32.totalorder %s89, %s91
      %p95 = scmp.eq.s32.totalorder %s20, 0
      %p96 = por %p94, %p95
      %p97 = scmp.ne.s32.totalorder %s89, %s91
      %p98 = scmp.eq.s32.totalorder %s25, 1
      %p99 = por %p97, %p98
      %p100 = scmp.ne.s32.totalorder %s91, %s92
      %p101 = scmp.eq.s32.totalorder %s25, 0
      %p102 = por %p100, %p101
      %p103 = scmp.ne.s32.totalorder %s91, %s92
      %p104 = scmp.eq.s32.totalorder %s26, 1
      %p105 = por %p103, %p104
      %p107 = scmp.ne.s32.totalorder %s92, %s106
      %p108 = scmp.eq.s32.totalorder %s26, 0
      %p109 = por %p107, %p108
      %s111 = sadd.s32 %s110, 1
      %p114 = scmp.eq.s32.totalorder %s20, 1
      %p115 = scmp.ne.s32.totalorder %s110, %s112
      %p116 = scmp.eq.s32.totalorder %s20, 0
      %p117 = por %p115, %p116
      %p118 = scmp.ne.s32.totalorder %s110, %s112
      %p119 = scmp.eq.s32.totalorder %s25, 1
      %p120 = por %p118, %p119
      %p121 = scmp.ne.s32.totalorder %s112, %s113
      %p122 = scmp.eq.s32.totalorder %s25, 0
      %p123 = por %p121, %p122
      %p124 = scmp.ne.s32.totalorder %s112, %s113
      %p125 = scmp.eq.s32.totalorder %s26, 1
      %p126 = por %p124, %p125
      %p128 = scmp.ne.s32.totalorder %s113, %s127
      %p129 = scmp.eq.s32.totalorder %s26, 0
      %p130 = por %p128, %p129
      %s131 = ssub.s32 %s27, %s39
      %s132 = ssub.s32 %s28, %s35
      %s133 = sor.u32 %s131, %s132
      %p134 = scmp.eq.s32.totalorder %s133, 0
      %s136 = sadd.s32 %s135, 1
      %s137 = scalar_select %p134, %s135, %s136
      %p140 = pneg %p134
      %p141 = scmp.eq.s32.totalorder %s20, 1
      %p142 = por %p140, %p141
      %p143 = scmp.ne.s32.totalorder %s135, %s138
      %p144 = scmp.eq.s32.totalorder %s20, 0
      %p145 = por %p143, %p144
      %p146 = scmp.ne.s32.totalorder %s135, %s138
      %p147 = scmp.eq.s32.totalorder %s25, 1
      %p148 = por %p146, %p147
      %p149 = scmp.ne.s32.totalorder %s138, %s139
      %p150 = scmp.eq.s32.totalorder %s25, 0
      %p151 = por %p149, %p150
      %p152 = scmp.ne.s32.totalorder %s138, %s139
      %p153 = scmp.eq.s32.totalorder %s26, 1
      %p154 = por %p152, %p153
      %p156 = scmp.ne.s32.totalorder %s139, %s155
      %p157 = scmp.eq.s32.totalorder %s26, 0
      %p158 = por %p156, %p157
      %s160 = sadd.s32 %s159, 1
      %p163 = scmp.eq.s32.totalorder %s20, 1
      %p164 = scmp.ne.s32.totalorder %s159, %s161
      %p165 = scmp.eq.s32.totalorder %s20, 0
      %p166 = por %p164, %p165
      %p167 = scmp.ne.s32.totalorder %s159, %s161
      %p168 = scmp.eq.s32.totalorder %s25, 1
      %p169 = por %p167, %p168
      %p170 = scmp.ne.s32.totalorder %s161, %s162
      %p171 = scmp.eq.s32.totalorder %s25, 0
      %p172 = por %p170, %p171
      %p173 = scmp.ne.s32.totalorder %s161, %s162
      %p174 = scmp.eq.s32.totalorder %s26, 1
      %p175 = por %p173, %p174
      %p177 = scmp.ne.s32.totalorder %s162, %s176
      %p178 = scmp.eq.s32.totalorder %s26, 0
      %p179 = por %p177, %p178
      %s181 = sadd.s32 %s180, 1
      %p184 = scmp.eq.s32.totalorder %s20, 1
      %p185 = scmp.ne.s32.totalorder %s180, %s182
      %p186 = scmp.eq.s32.totalorder %s20, 0
      %p187 = por %p185, %p186
      %p188 = scmp.ne.s32.totalorder %s180, %s182
      %p189 = scmp.eq.s32.totalorder %s25, 1
      %p190 = por %p188, %p189
      %p191 = scmp.ne.s32.totalorder %s182, %s183
      %p192 = scmp.eq.s32.totalorder %s25, 0
      %p193 = por %p191, %p192
      %p194 = scmp.ne.s32.totalorder %s182, %s183
      %p195 = scmp.eq.s32.totalorder %s26, 1
      %p196 = por %p194, %p195
      %p198 = scmp.ne.s32.totalorder %s183, %s197
      %p199 = scmp.eq.s32.totalorder %s26, 0
      %p200 = por %p198, %p199
      %s202 = sadd.s32 %s201, 1
      %p205 = scmp.eq.s32.totalorder %s20, 1
      %p206 = scmp.ne.s32.totalorder %s201, %s203
      %p207 = scmp.eq.s32.totalorder %s20, 0
      %p208 = por %p206, %p207
      %p209 = scmp.ne.s32.totalorder %s201, %s203
      %p210 = scmp.eq.s32.totalorder %s25, 1
      %p211 = por %p209, %p210
      %p212 = scmp.ne.s32.totalorder %s203, %s204
      %p213 = scmp.eq.s32.totalorder %s25, 0
      %p214 = por %p212, %p213
      %p215 = scmp.ne.s32.totalorder %s203, %s204
      %p216 = scmp.eq.s32.totalorder %s26, 1
      %p217 = por %p215, %p216
      %p219 = scmp.ne.s32.totalorder %s204, %s218
      %p220 = scmp.eq.s32.totalorder %s26, 0
      %p221 = por %p219, %p220
      %s223 = sadd.s32 %s222, 1
      %p226 = scmp.eq.s32.totalorder %s20, 1
      %p227 = scmp.ne.s32.totalorder %s222, %s224
      %p228 = scmp.eq.s32.totalorder %s20, 0
      %p229 = por %p227, %p228
      %p230 = scmp.ne.s32.totalorder %s222, %s224
      %p231 = scmp.eq.s32.totalorder %s25, 1
      %p232 = por %p230, %p231
      %p233 = scmp.ne.s32.totalorder %s224, %s225
      %p234 = scmp.eq.s32.totalorder %s25, 0
      %p235 = por %p233, %p234
      %p236 = scmp.ne.s32.totalorder %s224, %s225
      %p237 = scmp.eq.s32.totalorder %s26, 1
      %p238 = por %p236, %p237
      %p240 = scmp.ne.s32.totalorder %s225, %s239
      %p241 = scmp.eq.s32.totalorder %s26, 0
      %p242 = por %p240, %p241
      %s244 = sadd.s32 %s243, 1
      %p247 = scmp.eq.s32.totalorder %s20, 1
      %p248 = scmp.ne.s32.totalorder %s243, %s245
      %p249 = scmp.eq.s32.totalorder %s20, 0
      %p250 = por %p248, %p249
      %p251 = scmp.ne.s32.totalorder %s243, %s245
      %p252 = scmp.eq.s32.totalorder %s25, 1
      %p253 = por %p251, %p252
      %p254 = scmp.ne.s32.totalorder %s245, %s246
      %p255 = scmp.eq.s32.totalorder %s25, 0
      %p256 = por %p254, %p255
      %p257 = scmp.ne.s32.totalorder %s245, %s246
      %p258 = scmp.eq.s32.totalorder %s26, 1
      %p259 = por %p257, %p258
      %p261 = scmp.ne.s32.totalorder %s246, %s260
      %p262 = scmp.eq.s32.totalorder %s26, 0
      %p263 = por %p261, %p262
      %s265 = sadd.s32 %s264, 1
      %p268 = scmp.eq.s32.totalorder %s20, 1
      %p269 = scmp.ne.s32.totalorder %s264, %s266
      %p270 = scmp.eq.s32.totalorder %s20, 0
      %p271 = por %p269, %p270
      %p272 = scmp.ne.s32.totalorder %s264, %s266
      %p273 = scmp.eq.s32.totalorder %s25, 1
      %p274 = por %p272, %p273
      %p275 = scmp.ne.s32.totalorder %s266, %s267
      %p276 = scmp.eq.s32.totalorder %s25, 0
      %p277 = por %p275, %p276
      %p278 = scmp.ne.s32.totalorder %s266, %s267
      %p279 = scmp.eq.s32.totalorder %s26, 1
      %p280 = por %p278, %p279
      %p282 = scmp.ne.s32.totalorder %s267, %s281
      %p283 = scmp.eq.s32.totalorder %s26, 0
      %p284 = por %p282, %p283
      %s285 = ssub.s32 %s27, %s39
      %s286 = ssub.s32 %s28, %s35
      %s287 = sor.u32 %s285, %s286
      %p288 = scmp.eq.s32.totalorder %s287, 0
      %s290 = sadd.s32 %s289, 1
      %s291 = scalar_select %p288, %s289, %s290
      %p294 = pneg %p288
      %p295 = scmp.eq.s32.totalorder %s20, 1
      %p296 = por %p294, %p295
      %p297 = scmp.ne.s32.totalorder %s289, %s292
      %p298 = scmp.eq.s32.totalorder %s20, 0
      %p299 = por %p297, %p298
      %p300 = scmp.ne.s32.totalorder %s289, %s292
      %p301 = scmp.eq.s32.totalorder %s25, 1
      %p302 = por %p300, %p301
      %p303 = scmp.ne.s32.totalorder %s292, %s293
      %p304 = scmp.eq.s32.totalorder %s25, 0
      %p305 = por %p303, %p304
      %p306 = scmp.ne.s32.totalorder %s292, %s293
      %p307 = scmp.eq.s32.totalorder %s26, 1
      %p308 = por %p306, %p307
      %p310 = scmp.ne.s32.totalorder %s293, %s309
      %p311 = scmp.eq.s32.totalorder %s26, 0
      %p312 = por %p310, %p311
      %p313 = scmp.le.s32.totalorder 1, %s20
      %p314 = scmp.lt.s32.totalorder %s20, 3
      %p315 = pnand %p313, %p314
      %p316 = pneg %p315
      // Predicated region
      $region9: #{tpu_custom_call.1} parent=5 // pred_check
        _
      $region10: #{tpu_custom_call.1} parent=5 // pred_check_branch
        %318 = sbr.rel (%p315) target = $region12
      $region11: #{tpu_custom_call.1} parent=5 // pred_region
        %s319 = ssub.s32 %s20, 1
        // Predicated region
        $region13: #{tpu_custom_call.1} parent=11 // pred_check
          %p320 = pneg %p81
        $region14: #{tpu_custom_call.1} parent=11 // pred_check_branch
          %322 = sbr.rel (%p320) target = $region16
        $region15: #{tpu_custom_call.1} parent=11 // pred_region
          _
        $region16: #{tpu_custom_call.1} parent=11 // pred_fallthru
          _
        // Predicated region
        $region17: #{tpu_custom_call.1} parent=11 // pred_check
          %p323 = pneg %p102
        $region18: #{tpu_custom_call.1} parent=11 // pred_check_branch
          %325 = sbr.rel (%p323) target = $region20
        $region19: #{tpu_custom_call.1} parent=11 // pred_region
          _
        $region20: #{tpu_custom_call.1} parent=11 // pred_fallthru
          _
        // Predicated region
        $region21: #{tpu_custom_call.1} parent=11 // pred_check
          %p326 = pneg %p123
        $region22: #{tpu_custom_call.1} parent=11 // pred_check_branch
          %328 = sbr.rel (%p326) target = $region24
        $region23: #{tpu_custom_call.1} parent=11 // pred_region
          _
        $region24: #{tpu_custom_call.1} parent=11 // pred_fallthru
          _
        // Predicated region
        $region25: #{tpu_custom_call.1} parent=11 // pred_check
          %p329 = pneg %p172
        $region26: #{tpu_custom_call.1} parent=11 // pred_check_branch
          %331 = sbr.rel (%p329) target = $region28
        $region27: #{tpu_custom_call.1} parent=11 // pred_region
          _
        $region28: #{tpu_custom_call.1} parent=11 // pred_fallthru
          _
        // Predicated region
        $region29: #{tpu_custom_call.1} parent=11 // pred_check
          %p332 = pneg %p193
        $region30: #{tpu_custom_call.1} parent=11 // pred_check_branch
          %334 = sbr.rel (%p332) target = $region32
        $region31: #{tpu_custom_call.1} parent=11 // pred_region
          _
        $region32: #{tpu_custom_call.1} parent=11 // pred_fallthru
          _
        // Predicated region
        $region33: #{tpu_custom_call.1} parent=11 // pred_check
          %p335 = pneg %p214
        $region34: #{tpu_custom_call.1} parent=11 // pred_check_branch
          %337 = sbr.rel (%p335) target = $region36
        $region35: #{tpu_custom_call.1} parent=11 // pred_region
          _
        $region36: #{tpu_custom_call.1} parent=11 // pred_fallthru
          _
        // Predicated region
        $region37: #{tpu_custom_call.1} parent=11 // pred_check
          %p338 = pneg %p235
        $region38: #{tpu_custom_call.1} parent=11 // pred_check_branch
          %340 = sbr.rel (%p338) target = $region40
        $region39: #{tpu_custom_call.1} parent=11 // pred_region
          _
        $region40: #{tpu_custom_call.1} parent=11 // pred_fallthru
          _
        // Predicated region
        $region41: #{tpu_custom_call.1} parent=11 // pred_check
          %p341 = pneg %p256
        $region42: #{tpu_custom_call.1} parent=11 // pred_check_branch
          %343 = sbr.rel (%p341) target = $region44
        $region43: #{tpu_custom_call.1} parent=11 // pred_region
          _
        $region44: #{tpu_custom_call.1} parent=11 // pred_fallthru
          _
        // Predicated region
        $region45: #{tpu_custom_call.1} parent=11 // pred_check
          %p344 = pneg %p277
        $region46: #{tpu_custom_call.1} parent=11 // pred_check_branch
          %346 = sbr.rel (%p344) target = $region48
        $region47: #{tpu_custom_call.1} parent=11 // pred_region
          _
        $region48: #{tpu_custom_call.1} parent=11 // pred_fallthru
          _
      $region12: #{tpu_custom_call.1} parent=5 // pred_fallthru
        _
      %p347 = scmp.lt.s32.totalorder %s20, 2
      // Predicated region
      $region49: #{tpu_custom_call.1} parent=5 // pred_check
        %p348 = pneg %p347
      $region50: #{tpu_custom_call.1} parent=5 // pred_check_branch
        %350 = sbr.rel (%p348) target = $region52
      $region51: #{tpu_custom_call.1} parent=5 // pred_region
        // Predicated region
        $region53: #{tpu_custom_call.1} parent=51 // pred_check
          %p351 = pneg %p54
        $region54: #{tpu_custom_call.1} parent=51 // pred_check_branch
          %353 = sbr.rel (%p351) target = $region56
        $region55: #{tpu_custom_call.1} parent=51 // pred_region
          %s354 = smul.u32 2, %s28
          %p355 = scmp.lt.s32.totalorder %s27, 1
          %s356 = scalar_select %p355, %s27, 1
          %p357 = scmp.lt.s32.totalorder %s354, 1
          %s358 = scalar_select %p357, %s354, 1
          %s359 = smul.addr %s356, 2
          %s360 = sadd.s32 %s358, %s359
          %s361 = smul.addr %s360, 4
          %s362 = scalar_lea.vmem %s0, %s361
          %s363 = smul.u32 2, %s28
        $region56: #{tpu_custom_call.1} parent=51 // pred_fallthru
          _
        // Predicated region
        $region57: #{tpu_custom_call.1} parent=51 // pred_check
          %p364 = pneg %p145
        $region58: #{tpu_custom_call.1} parent=51 // pred_check_branch
          %366 = sbr.rel (%p364) target = $region60
        $region59: #{tpu_custom_call.1} parent=51 // pred_region
          %s367 = smul.u32 2, %s28
          %p368 = scmp.lt.s32.totalorder %s27, 1
          %s369 = scalar_select %p368, %s27, 1
          %p370 = scmp.lt.s32.totalorder %s367, 1
          %s371 = scalar_select %p370, %s367, 1
          %s372 = smul.addr %s369, 2
          %s373 = sadd.s32 %s371, %s372
          %s374 = smul.addr %s373, 4
          %s375 = scalar_lea.vmem %s4, %s374
          %s376 = smul.u32 2, %s28
        $region60: #{tpu_custom_call.1} parent=51 // pred_fallthru
          _
      $region52: #{tpu_custom_call.1} parent=5 // pred_fallthru
        _
      %p377 = scmp.le.s32.totalorder 1, %s20
      %p378 = scmp.lt.s32.totalorder %s20, 3
      %p379 = pnand %p377, %p378
      %p380 = pneg %p379
      // Predicated region
      $region61: #{tpu_custom_call.1} parent=5 // pred_check
        _
      $region62: #{tpu_custom_call.1} parent=5 // pred_check_branch
        %382 = sbr.rel (%p379) target = $region64
      $region63: #{tpu_custom_call.1} parent=5 // pred_region
        %s383 = ssub.s32 %s20, 1
        %s384 = smul.u32 2, %s30
        %p385 = scmp.lt.s32.totalorder %s29, 1
        %s386 = scalar_select %p385, %s29, 1
        %p387 = scmp.lt.s32.totalorder %s384, 1
        %s388 = scalar_select %p387, %s384, 1
        %s389 = smul.addr %s386, 2
        %s390 = sadd.s32 %s388, %s389
        %s391 = smul.addr %s390, 4
        %s392 = scalar_lea.vmem %s0, %s391
        %p393 = pneg %p60
        %p394 = pneg %p57
        %p395 = pneg %p81
        %p396 = pneg %p78
        %p397 = pneg %p102
        %p398 = pneg %p99
        %p399 = pneg %p123
        %p400 = pneg %p120
        %s401 = smul.u32 2, %s30
        %p402 = scmp.lt.s32.totalorder %s29, 1
        %s403 = scalar_select %p402, %s29, 1
        %p404 = scmp.lt.s32.totalorder %s401, 1
        %s405 = scalar_select %p404, %s401, 1
        %s406 = smul.addr %s403, 2
        %s407 = sadd.s32 %s405, %s406
        %s408 = smul.addr %s407, 4
        %s409 = scalar_lea.vmem %s4, %s408
        %p410 = pneg %p151
        %p411 = pneg %p148
        %p412 = pneg %p172
        %p413 = pneg %p169
        %p414 = pneg %p193
        %p415 = pneg %p190
        %p416 = pneg %p214
        %p417 = pneg %p211
        %p418 = pneg %p235
        %p419 = pneg %p232
        %p420 = pneg %p256
        %p421 = pneg %p253
        %p422 = pneg %p277
        %p423 = pneg %p274
        %p424 = pneg %p305
        %p425 = pneg %p302
        %s426 = sand.u32 %s292, 1
        %s427 = scalar_lea.sflag [#allocation3], %s426
        %s428 = sand.u32 %s292, 1
        %s429 = smul.addr %s428, 16
        %s430 = scalar_lea.vmem [#allocation2], %s429
        %s431 = smul.u32 2, %s30
        %p432 = scmp.lt.s32.totalorder %s29, 1
        %s433 = scalar_select %p432, %s29, 1
        %p434 = scmp.lt.s32.totalorder %s431, 1
        %s435 = scalar_select %p434, %s431, 1
        %s436 = smul.addr %s433, 2
        %s437 = sadd.s32 %s435, %s436
        %s438 = smul.addr %s437, 4
        %s439 = scalar_lea.vmem %s0, %s438
        %s440 = smul.u32 2, %s30
        %s441 = smul.u32 2, %s30
        %p442 = scmp.lt.s32.totalorder %s29, 1
        %s443 = scalar_select %p442, %s29, 1
        %p444 = scmp.lt.s32.totalorder %s441, 1
        %s445 = scalar_select %p444, %s441, 1
        %s446 = smul.addr %s443, 2
        %s447 = sadd.s32 %s445, %s446
        %s448 = smul.addr %s447, 4
        %s449 = scalar_lea.vmem %s4, %s448
        %s450 = smul.u32 2, %s30
        %s451 = smul.u32 2, %s30
        %v452 = vld [vmem:[%s439] sm:$0xff]
        %v453 = vld [vmem:[%s1] sm:$0xf]
        %455 = vset.pattern.permute.xlu0 0
        %456 = vperm.xlu0 %455, %v453
        %v457 = vpop.permute.xlu0 %456
        %v459 = vunpack.c.l.s4 839922192
        %v460 = vunpack.c.0.s8 %v459
        %v461 = vlaneseq
        %v462 = vshrl.u32 %v461, 7
        %v463 = vsub.s32 %v460, %v462
        %v464 = vrot.slane %v457, %v463
        %v466 = vmul.f32 %v452, %v464
        %v467 = vld [vmem:[%s2] sm:$0xf]
        %469 = vset.pattern.permute.xlu0 0
        %470 = vperm.xlu0 %469, %v467
        %v471 = vpop.permute.xlu0 %470
        %v473 = vunpack.c.l.s4 839922192
        %v474 = vunpack.c.0.s8 %v473
        %v475 = vlaneseq
        %v476 = vshrl.u32 %v475, 7
        %v477 = vsub.s32 %v474, %v476
        %v478 = vrot.slane %v471, %v477
        %v480 = vadd.f32 %v466, %v478
        %v481 = vmax.f32 %v480, 0.0
        %v482 = vld [vmem:[%s3] sm:$0xff]
        %v483 = vld [vmem:[%s3 + $0x8] sm:$0xff]
        %v484 = vld [vmem:[%s3 + $0x10] sm:$0xff]
        %v485 = vld [vmem:[%s3 + $0x18] sm:$0xff]
        %v486 = vld [vmem:[%s449] sm:$0xff]
        %v487 = vld [vmem:[%s5] sm:$0xf]
        %489 = vset.pattern.permute.xlu0 0
        %490 = vperm.xlu0 %489, %v487
        %v491 = vpop.permute.xlu0 %490
        %v493 = vunpack.c.l.s4 839922192
        %v494 = vunpack.c.0.s8 %v493
        %v495 = vlaneseq
        %v496 = vshrl.u32 %v495, 7
        %v497 = vsub.s32 %v494, %v496
        %v498 = vrot.slane %v491, %v497
        %v500 = vmul.f32 %v486, %v498
        %v501 = vld [vmem:[%s6] sm:$0xf]
        %503 = vset.pattern.permute.xlu0 0
        %504 = vperm.xlu0 %503, %v501
        %v505 = vpop.permute.xlu0 %504
        %v507 = vunpack.c.l.s4 839922192
        %v508 = vunpack.c.0.s8 %v507
        %v509 = vlaneseq
        %v510 = vshrl.u32 %v509, 7
        %v511 = vsub.s32 %v508, %v510
        %v512 = vrot.slane %v505, %v511
        %v514 = vadd.f32 %v500, %v512
        %v515 = vmax.f32 %v514, 0.0
        %v516 = vld [vmem:[%s7] sm:$0xff]
        %v517 = vld [vmem:[%s7 + $0x8] sm:$0xff]
        %v518 = vld [vmem:[%s7 + $0x10] sm:$0xff]
        %v519 = vld [vmem:[%s7 + $0x18] sm:$0xff]
        %v521 = vcombine.high %v515, %v515
        %vm522 = vcmask 31744
        %v524 = vsel %vm522, %v516, 0
        %v527 = vsel %vm522, %v517, 0
        %v530 = vsel %vm522, %v518, 0
        %v533 = vsel %vm522, %v519, 0
        %vm535 = vcmask 1043456
        %v536 = vsel %vm535, %v515, 0
        %v538 = vsel %vm535, %v521, 0
        %540 = vmatprep.subr.mxu0 0.0
        %541 = vmatpush1.msra.mxu0 0.0
        %542 = vmatprep.subr.mxu0 0.0
        %543 = vmatpush1.msra.mxu0 0.0
        %544 = vmatprep.subr.mxu0 0.0
        %545 = vmatpush1.msra.mxu0 0.0
        %546 = vmatprep.subr.mxu0 0.0
        %547 = vmatpush1.msra.mxu0 0.0
        %548 = vmatprep.subr.mxu0 0.0
        %549 = vmatpush1.msra.mxu0 0.0
        %550 = vmatprep.subr.mxu0 0.0
        %551 = vmatpush1.msra.mxu0 0.0
        %552 = vmatprep.subr.mxu0 0.0
        %553 = vmatpush1.msra.mxu0 0.0
        %554 = vmatprep.subr.mxu0 0.0
        %555 = vmatpush1.msra.mxu0 0.0
        %556 = vmatprep.subr.mxu0 0.0
        %557 = vmatpush1.msra.mxu0 0.0
        %558 = vmatprep.subr.mxu0 0.0
        %559 = vmatpush1.msra.mxu0 0.0
        %560 = vmatprep.subr.mxu0 0.0
        %561 = vmatpush1.msra.mxu0 0.0
        %562 = vmatprep.subr.mxu0 0.0
        %563 = vmatpush1.msra.mxu0 0.0
        %564 = vmatprep.subr.mxu0 0.0
        %565 = vmatpush1.msra.mxu0 0.0
        %566 = vmatprep.subr.mxu0 0.0
        %567 = vmatpush1.msra.mxu0 0.0
        %568 = vmatprep.subr.mxu0 0.0
        %569 = vmatpush1.msra.mxu0 0.0
        %570 = vmatprep.subr.mxu0 %v538
        %571 = vmatpush1.msra.mxu0 %v536
        %572 = vmatprep.subr.mxu0 0.0
        %573 = vmatpush2.msra.mxu0 0.0
        %574 = vmatprep.subr.mxu0 0.0
        %575 = vmatpush2.msra.mxu0 0.0
        %576 = vmatprep.subr.mxu0 0.0
        %577 = vmatpush2.msra.mxu0 0.0
        %578 = vmatprep.subr.mxu0 0.0
        %579 = vmatpush2.msra.mxu0 0.0
        %580 = vmatprep.subr.mxu0 0.0
        %581 = vmatpush2.msra.mxu0 0.0
        %582 = vmatprep.subr.mxu0 0.0
        %583 = vmatpush2.msra.mxu0 0.0
        %584 = vmatprep.subr.mxu0 0.0
        %585 = vmatpush2.msra.mxu0 0.0
        %586 = vmatprep.subr.mxu0 0.0
        %587 = vmatpush2.msra.mxu0 0.0
        %588 = vmatprep.subr.mxu0 0.0
        %589 = vmatpush2.msra.mxu0 0.0
        %590 = vmatprep.subr.mxu0 0.0
        %591 = vmatpush2.msra.mxu0 0.0
        %592 = vmatprep.subr.mxu0 0.0
        %593 = vmatpush2.msra.mxu0 0.0
        %594 = vmatprep.subr.mxu0 0.0
        %595 = vmatpush2.msra.mxu0 0.0
        %596 = vmatprep.subr.mxu0 0.0
        %597 = vmatpush2.msra.mxu0 0.0
        %598 = vmatprep.subr.mxu0 0.0
        %599 = vmatpush2.msra.mxu0 0.0
        %600 = vmatprep.subr.mxu0 0.0
        %601 = vmatpush2.msra.mxu0 0.0
        %602 = vmatprep.subr.mxu0 0.0
        %603 = vmatpush2.msra.mxu0 0.0
        %604 = vmatprep.mubr.f32.mxu0 0.0
        %605 = vmatmul.mubr.f32.gmra.mxu0 %v524
        %v606 = vpop.f32.mrf.mxu0
        %v607 = vadd.f32 0.0, %v606
        %v608 = vpop.f32.mrf.mxu0
        %v609 = vadd.f32 0.0, %v608
        %610 = vmatprep.mubr.f32.mxu0 0.0
        %611 = vmatmul.mubr.f32.gmra.mxu0 %v527
        %v612 = vpop.f32.mrf.mxu0
        %v613 = vadd.f32 0.0, %v612
        %v614 = vpop.f32.mrf.mxu0
        %v615 = vadd.f32 0.0, %v614
        %616 = vmatprep.mubr.f32.mxu0 0.0
        %617 = vmatmul.mubr.f32.gmra.mxu0 %v530
        %v618 = vpop.f32.mrf.mxu0
        %v619 = vadd.f32 0.0, %v618
        %v620 = vpop.f32.mrf.mxu0
        %v621 = vadd.f32 0.0, %v620
        %622 = vmatprep.mubr.f32.mxu0 0.0
        %623 = vmatmul.mubr.f32.gmra.mxu0 %v533
        %v624 = vpop.f32.mrf.mxu0
        %v625 = vadd.f32 0.0, %v624
        %v626 = vpop.f32.mrf.mxu0
        %v627 = vadd.f32 0.0, %v626
        %628 = vdwg.mxu0
        %v630 = vcombine.high %v481, %v481
        %v632 = vsel %vm522, %v482, 0
        %v635 = vsel %vm522, %v483, 0
        %v638 = vsel %vm522, %v484, 0
        %v641 = vsel %vm522, %v485, 0
        %v643 = vsel %vm535, %v481, 0
        %v645 = vsel %vm535, %v630, 0
        %647 = vmatprep.subr.mxu0 0.0
        %648 = vmatpush1.msra.mxu0 0.0
        %649 = vmatprep.subr.mxu0 0.0
        %650 = vmatpush1.msra.mxu0 0.0
        %651 = vmatprep.subr.mxu0 0.0
        %652 = vmatpush1.msra.mxu0 0.0
        %653 = vmatprep.subr.mxu0 0.0
        %654 = vmatpush1.msra.mxu0 0.0
        %655 = vmatprep.subr.mxu0 0.0
        %656 = vmatpush1.msra.mxu0 0.0
        %657 = vmatprep.subr.mxu0 0.0
        %658 = vmatpush1.msra.mxu0 0.0
        %659 = vmatprep.subr.mxu0 0.0
        %660 = vmatpush1.msra.mxu0 0.0
        %661 = vmatprep.subr.mxu0 0.0
        %662 = vmatpush1.msra.mxu0 0.0
        %663 = vmatprep.subr.mxu0 0.0
        %664 = vmatpush1.msra.mxu0 0.0
        %665 = vmatprep.subr.mxu0 0.0
        %666 = vmatpush1.msra.mxu0 0.0
        %667 = vmatprep.subr.mxu0 0.0
        %668 = vmatpush1.msra.mxu0 0.0
        %669 = vmatprep.subr.mxu0 0.0
        %670 = vmatpush1.msra.mxu0 0.0
        %671 = vmatprep.subr.mxu0 0.0
        %672 = vmatpush1.msra.mxu0 0.0
        %673 = vmatprep.subr.mxu0 0.0
        %674 = vmatpush1.msra.mxu0 0.0
        %675 = vmatprep.subr.mxu0 0.0
        %676 = vmatpush1.msra.mxu0 0.0
        %677 = vmatprep.subr.mxu0 %v645
        %678 = vmatpush1.msra.mxu0 %v643
        %679 = vmatprep.subr.mxu0 0.0
        %680 = vmatpush2.msra.mxu0 0.0
        %681 = vmatprep.subr.mxu0 0.0
        %682 = vmatpush2.msra.mxu0 0.0
        %683 = vmatprep.subr.mxu0 0.0
        %684 = vmatpush2.msra.mxu0 0.0
        %685 = vmatprep.subr.mxu0 0.0
        %686 = vmatpush2.msra.mxu0 0.0
        %687 = vmatprep.subr.mxu0 0.0
        %688 = vmatpush2.msra.mxu0 0.0
        %689 = vmatprep.subr.mxu0 0.0
        %690 = vmatpush2.msra.mxu0 0.0
        %691 = vmatprep.subr.mxu0 0.0
        %692 = vmatpush2.msra.mxu0 0.0
        %693 = vmatprep.subr.mxu0 0.0
        %694 = vmatpush2.msra.mxu0 0.0
        %695 = vmatprep.subr.mxu0 0.0
        %696 = vmatpush2.msra.mxu0 0.0
        %697 = vmatprep.subr.mxu0 0.0
        %698 = vmatpush2.msra.mxu0 0.0
        %699 = vmatprep.subr.mxu0 0.0
        %700 = vmatpush2.msra.mxu0 0.0
        %701 = vmatprep.subr.mxu0 0.0
        %702 = vmatpush2.msra.mxu0 0.0
        %703 = vmatprep.subr.mxu0 0.0
        %704 = vmatpush2.msra.mxu0 0.0
        %705 = vmatprep.subr.mxu0 0.0
        %706 = vmatpush2.msra.mxu0 0.0
        %707 = vmatprep.subr.mxu0 0.0
        %708 = vmatpush2.msra.mxu0 0.0
        %709 = vmatprep.subr.mxu0 0.0
        %710 = vmatpush2.msra.mxu0 0.0
        %711 = vmatprep.mubr.f32.mxu0 0.0
        %712 = vmatmul.mubr.f32.gmra.mxu0 %v632
        %v713 = vpop.f32.mrf.mxu0
        %v714 = vadd.f32 %v607, %v713
        %v715 = vpop.f32.mrf.mxu0
        %v716 = vadd.f32 %v609, %v715
        %717 = vmatprep.mubr.f32.mxu0 0.0
        %718 = vmatmul.mubr.f32.gmra.mxu0 %v635
        %v719 = vpop.f32.mrf.mxu0
        %v720 = vadd.f32 %v613, %v719
        %v721 = vpop.f32.mrf.mxu0
        %v722 = vadd.f32 %v615, %v721
        %723 = vmatprep.mubr.f32.mxu0 0.0
        %724 = vmatmul.mubr.f32.gmra.mxu0 %v638
        %v725 = vpop.f32.mrf.mxu0
        %v726 = vadd.f32 %v619, %v725
        %v727 = vpop.f32.mrf.mxu0
        %v728 = vadd.f32 %v621, %v727
        %729 = vmatprep.mubr.f32.mxu0 0.0
        %730 = vmatmul.mubr.f32.gmra.mxu0 %v641
        %v731 = vpop.f32.mrf.mxu0
        %v732 = vadd.f32 %v625, %v731
        %v733 = vpop.f32.mrf.mxu0
        %v734 = vadd.f32 %v627, %v733
        %735 = vdwg.mxu0
        %v736 = vld [vmem:[%s8] sm:$0xff]
        %v737 = vld [vmem:[%s8 + $0x8] sm:$0xff]
        %v738 = vld [vmem:[%s8 + $0x10] sm:$0xff]
        %v739 = vld [vmem:[%s8 + $0x18] sm:$0xff]
        %741 = vset.pattern.permute.xlu0 0
        %742 = vperm.xlu0 %741, %v736
        %v743 = vpop.permute.xlu0 %742
        %746 = vset.pattern.permute.xlu0 0
        %747 = vperm.xlu0 %746, %v737
        %v748 = vpop.permute.xlu0 %747
        %751 = vset.pattern.permute.xlu0 0
        %752 = vperm.xlu0 %751, %v738
        %v753 = vpop.permute.xlu0 %752
        %756 = vset.pattern.permute.xlu0 0
        %757 = vperm.xlu0 %756, %v739
        %v758 = vpop.permute.xlu0 %757
        %v760 = vadd.f32 %v714, %v743
        %v761 = vadd.f32 %v716, %v743
        %v762 = vadd.f32 %v720, %v748
        %v763 = vadd.f32 %v722, %v748
        %v764 = vadd.f32 %v726, %v753
        %v765 = vadd.f32 %v728, %v753
        %v766 = vadd.f32 %v732, %v758
        %v767 = vadd.f32 %v734, %v758
        %v768 = vmax.f32 %v760, 0.0
        %v769 = vmax.f32 %v761, 0.0
        %v770 = vmax.f32 %v762, 0.0
        %v771 = vmax.f32 %v763, 0.0
        %v772 = vmax.f32 %v764, 0.0
        %v773 = vmax.f32 %v765, 0.0
        %v774 = vmax.f32 %v766, 0.0
        %v775 = vmax.f32 %v767, 0.0
        %v776 = vld [vmem:[%s9] sm:$0xff]
        %v777 = vld [vmem:[%s10] sm:$0xff]
        %779 = vset.pattern.permute.xlu0 0
        %780 = vperm.xlu0 %779, %v777
        %v781 = vpop.permute.xlu0 %780
        %vm783 = vcmask 261120
        %v785 = vsel %vm783, %v776, 0
        %787 = vmatprep.subr.mxu0 0.0
        %788 = vmatpush1.msra.mxu0 0.0
        %789 = vmatprep.subr.mxu0 0.0
        %790 = vmatpush1.msra.mxu0 0.0
        %791 = vmatprep.subr.mxu0 0.0
        %792 = vmatpush1.msra.mxu0 0.0
        %793 = vmatprep.subr.mxu0 0.0
        %794 = vmatpush1.msra.mxu0 0.0
        %795 = vmatprep.subr.mxu0 0.0
        %796 = vmatpush1.msra.mxu0 0.0
        %797 = vmatprep.subr.mxu0 0.0
        %798 = vmatpush1.msra.mxu0 0.0
        %799 = vmatprep.subr.mxu0 0.0
        %800 = vmatpush1.msra.mxu0 0.0
        %801 = vmatprep.subr.mxu0 0.0
        %802 = vmatpush1.msra.mxu0 0.0
        %803 = vmatprep.subr.mxu0 0.0
        %804 = vmatpush1.msra.mxu0 0.0
        %805 = vmatprep.subr.mxu0 0.0
        %806 = vmatpush1.msra.mxu0 0.0
        %807 = vmatprep.subr.mxu0 0.0
        %808 = vmatpush1.msra.mxu0 0.0
        %809 = vmatprep.subr.mxu0 0.0
        %810 = vmatpush1.msra.mxu0 0.0
        %811 = vmatprep.subr.mxu0 %v775
        %812 = vmatpush1.msra.mxu0 %v774
        %813 = vmatprep.subr.mxu0 %v773
        %814 = vmatpush1.msra.mxu0 %v772
        %815 = vmatprep.subr.mxu0 %v771
        %816 = vmatpush1.msra.mxu0 %v770
        %817 = vmatprep.subr.mxu0 %v769
        %818 = vmatpush1.msra.mxu0 %v768
        %819 = vmatprep.subr.mxu0 0.0
        %820 = vmatpush2.msra.mxu0 0.0
        %821 = vmatprep.subr.mxu0 0.0
        %822 = vmatpush2.msra.mxu0 0.0
        %823 = vmatprep.subr.mxu0 0.0
        %824 = vmatpush2.msra.mxu0 0.0
        %825 = vmatprep.subr.mxu0 0.0
        %826 = vmatpush2.msra.mxu0 0.0
        %827 = vmatprep.subr.mxu0 0.0
        %828 = vmatpush2.msra.mxu0 0.0
        %829 = vmatprep.subr.mxu0 0.0
        %830 = vmatpush2.msra.mxu0 0.0
        %831 = vmatprep.subr.mxu0 0.0
        %832 = vmatpush2.msra.mxu0 0.0
        %833 = vmatprep.subr.mxu0 0.0
        %834 = vmatpush2.msra.mxu0 0.0
        %835 = vmatprep.subr.mxu0 0.0
        %836 = vmatpush2.msra.mxu0 0.0
        %837 = vmatprep.subr.mxu0 0.0
        %838 = vmatpush2.msra.mxu0 0.0
        %839 = vmatprep.subr.mxu0 0.0
        %840 = vmatpush2.msra.mxu0 0.0
        %841 = vmatprep.subr.mxu0 0.0
        %842 = vmatpush2.msra.mxu0 0.0
        %843 = vmatprep.subr.mxu0 0.0
        %844 = vmatpush2.msra.mxu0 0.0
        %845 = vmatprep.subr.mxu0 0.0
        %846 = vmatpush2.msra.mxu0 0.0
        %847 = vmatprep.subr.mxu0 0.0
        %848 = vmatpush2.msra.mxu0 0.0
        %849 = vmatprep.subr.mxu0 0.0
        %850 = vmatpush2.msra.mxu0 0.0
        %851 = vmatprep.mubr.f32.mxu0 0.0
        %852 = vmatmul.mubr.f32.gmra.mxu0 %v785
        %v853 = vpop.f32.mrf.mxu0
        %v854 = vadd.f32 %v781, %v853
        %v855 = vpop.f32.mrf.mxu0
        %v856 = vadd.f32 %v781, %v855
        %857 = vdwg.mxu0
        %858 = vst [vmem:[%s430] sm:$0xff] %v854
        %859 = vst [vmem:[%s430 + $0x8] sm:$0xff] %v856
        %s860 = sand.u32 %s292, 1
        %s861 = scalar_lea.sflag [#allocation3], %s860
        %s862 = sand.u32 %s292, 1
        %s863 = smul.addr %s862, 16
        %s864 = scalar_lea.vmem [#allocation2], %s863
        // Predicated region
        $region65: #{tpu_custom_call.1} parent=63 // pred_check
          %p865 = pneg %p302
        $region66: #{tpu_custom_call.1} parent=63 // pred_check_branch
          %867 = sbr.rel (%p865) target = $region68
        $region67: #{tpu_custom_call.1} parent=63 // pred_region
          %s868 = smul.u32 2, %s30
          %s870 = ssub.s32 256, 256
          %871 = vsyncadd %s861, %s870
          %s872 = smul.addr %s29, 2
          %s873 = sadd.s32 %s868, %s872
          %s874 = smul.addr %s873, 128
          %s875 = scalar_lea.hbm %s11, %s874
          %s877 = sshll.u32 %s864, 4
          %s878 = int_to_ptr.vmem [resolvable:$true] %s877
          %880 = dma.vmem_to_hbm [thread:$0]  %s878, 256, %s875, %s861
        $region68: #{tpu_custom_call.1} parent=63 // pred_fallthru
          _
      $region64: #{tpu_custom_call.1} parent=5 // pred_fallthru
        _
      %p881 = scmp.le.s32.totalorder 2, %s20
      // Predicated region
      $region69: #{tpu_custom_call.1} parent=5 // pred_check
        %p882 = pneg %p881
      $region70: #{tpu_custom_call.1} parent=5 // pred_check_branch
        %884 = sbr.rel (%p882) target = $region72
      $region71: #{tpu_custom_call.1} parent=5 // pred_region
        %s885 = ssub.s32 %s20, 2
        // Predicated region
        $region73: #{tpu_custom_call.1} parent=71 // pred_check
          %p886 = pneg %p308
        $region74: #{tpu_custom_call.1} parent=71 // pred_check_branch
          %888 = sbr.rel (%p886) target = $region76
        $region75: #{tpu_custom_call.1} parent=71 // pred_region
          %s889 = sand.u32 %s293, 1
          %s890 = scalar_lea.sflag [#allocation3], %s889
          %s891 = sand.u32 %s293, 1
          %s892 = smul.addr %s891, 16
          %s893 = scalar_lea.vmem [#allocation2], %s892
          %894 = dma.done %s890, 256
        $region76: #{tpu_custom_call.1} parent=71 // pred_fallthru
          _
      $region72: #{tpu_custom_call.1} parent=5 // pred_fallthru
        _
    $region6: #{tpu_custom_call.1} parent=1 // loop_footer
      %s24 = sadd.s32 1, %s20
    $region7: #{tpu_custom_call.1} parent=1 // loop_footer_branch
      %19 = sbr.rel target = $region3
    $region8: #{tpu_custom_call.1} parent=1 // loop_exit
      _
    %895 = vsyncpa [#allocation3], 1
    %s896 = scalar_lea.sflag [#allocation3], 1
    %897 = vsyncpa %s896, 1

</llo_original>
